<compile_context>
chip_gen: v5e
topology: v5e:2x2
jax: 0.10.0
libtpu: 0.0.40
codegen_flags: <defaults>
</compile_context>

<pallas_src>
import functools

import jax
import jax.numpy as jnp
from jax.experimental import pallas as pl
from jax.experimental.pallas import tpu as pltpu


# ----------------------------- Pallas kernel --------------------------------

def _gnn_kernel(dst_row_ref, src_col_ref, batch_ref, x_ref,
                w1_ref, g1_ref, be1_ref,
                w2_ref, g2_ref, be2_ref,
                w3_ref, b3_ref,
                wlin_ref, blin_ref,
                out_ref):
    f32 = jnp.float32
    x = x_ref[...]
    n = x_ref.shape[0]
    e = dst_row_ref.shape[1]
    ng = out_ref.shape[0]

    # ---- adjacency built in VMEM from the padded edge list (no NxN HBM I/O).
    # dst_oh[i, k] = 1 iff dst[k] == i ; src_oh[k, j] = 1 iff src[k] == j
    # A[i, j] = sum_k dst_oh[i, k] * src_oh[k, j] = #edges (j -> i).
    # Padding entries are -1 and never match the [0, n) iota, so they add 0.
    dst_oh = (jax.lax.broadcasted_iota(jnp.int32, (n, e), 0)
              == dst_row_ref[...]).astype(f32)                       # (N, E)
    src_oh = (jax.lax.broadcasted_iota(jnp.int32, (e, n), 1)
              == src_col_ref[...]).astype(f32)                       # (E, N)
    A = jnp.dot(dst_oh, src_oh, preferred_element_type=f32)          # (N, N)

    # ---- mean-pool matrix from the batch assignment vector.
    onehot = (jax.lax.broadcasted_iota(jnp.int32, (ng, n), 0)
              == batch_ref[...]).astype(f32)                         # (G, N)
    counts = jnp.sum(onehot, axis=1, keepdims=True)
    P = onehot / jnp.maximum(counts, 1.0)

    def batch_norm(h, gamma_ref, beta_ref):
        # Training-mode batch statistics; one-pass variance (clamped at 0),
        # gamma folded into the rsqrt scale so only 2 broadcast VPU passes
        # plus one h*h pass touch the full (N, C) tile.
        mean = jnp.mean(h, axis=0, keepdims=True)
        var = jnp.maximum(
            jnp.mean(h * h, axis=0, keepdims=True) - mean * mean, 0.0)
        scale = jax.lax.rsqrt(var + 1e-5) * gamma_ref[...]           # (1, C)
        shift = beta_ref[...] - mean * scale                         # (1, C)
        return h * scale + shift

    # ---- layer 1: project-then-aggregate with fused [Wr | Wn] (split at
    #      lane 128).  x@Wr + A@(x@Wn) == x@Wr + (A@x)@Wn.
    #      (bias b1 dropped: cancels exactly under the following BatchNorm)
    f1 = w1_ref.shape[1] // 2
    hw1 = jnp.dot(x, w1_ref[...], preferred_element_type=f32)        # (N, 256)
    h1 = hw1[:, :f1] + jnp.dot(A, hw1[:, f1:], preferred_element_type=f32)
    h1 = jnp.maximum(batch_norm(h1, g1_ref, be1_ref), 0.0)

    # ---- layer 2 (bias b2 dropped: cancels under BatchNorm)
    f2 = w2_ref.shape[1] // 2
    hw2 = jnp.dot(h1, w2_ref[...], preferred_element_type=f32)       # (N, 128)
    h2 = hw2[:, :f2] + jnp.dot(A, hw2[:, f2:], preferred_element_type=f32)
    h2 = jnp.maximum(batch_norm(h2, g2_ref, be2_ref), 0.0)

    # ---- layer 3 (bias kept: no BN after)
    f3 = w3_ref.shape[1] // 2
    hw3 = jnp.dot(h2, w3_ref[...], preferred_element_type=f32)       # (N, 64)
    h3 = (hw3[:, :f3]
          + jnp.dot(A, hw3[:, f3:], preferred_element_type=f32)
          + b3_ref[...])
    h3 = jnp.maximum(h3, 0.0)

    # ---- global_mean_pool + Linear + log_softmax
    # TODO(synk): Dropout(p=0.4) is identity at inference; not applied here.
    pooled = jnp.dot(P, h3, preferred_element_type=f32)              # (G, 32)
    logits = (jnp.dot(pooled, wlin_ref[...], preferred_element_type=f32)
              + blin_ref[...])                                       # (G, C)
    z = logits - jnp.max(logits, axis=-1, keepdims=True)
    lse = jnp.log(jnp.sum(jnp.exp(z), axis=-1, keepdims=True))
    out_ref[...] = z - lse


# ------------------------------ JAX wrapper ----------------------------------

@functools.partial(jax.jit, static_argnames=("num_graphs",))
def captcha_gnn_forward(x, edge_index, batch, params, *, num_graphs):
    n, f_in = x.shape
    num_edges = edge_index.shape[1]

    # Pad the edge list to a multiple of 128 lanes with -1 sentinels (they can
    # never match a node id, so padded edges contribute nothing to A). The
    # kernel receives only these small int32 vectors — no (N, N) HBM array.
    e_pad = max(128, ((num_edges + 127) // 128) * 128)
    pad = e_pad - num_edges
    src = jnp.pad(edge_index[0].astype(jnp.int32), (0, pad), constant_values=-1)
    dst = jnp.pad(edge_index[1].astype(jnp.int32), (0, pad), constant_values=-1)
    dst_row = dst.reshape(1, e_pad)          # compared against a (N, E) row-iota
    src_col = src.reshape(e_pad, 1)          # compared against a (E, N) col-iota
    batch_row = batch.astype(jnp.int32).reshape(1, n)

    # Fuse root/neighbor projections into one wide MXU contraction per layer;
    # neighbor half starts at an output-column multiple of its own width
    # (layer 1's split is exactly at lane 128).
    w1s = jnp.concatenate([params["wr1"], params["wn1"]], axis=1)  # (16, 256)
    w2s = jnp.concatenate([params["wr2"], params["wn2"]], axis=1)  # (128, 128)
    w3s = jnp.concatenate([params["wr3"], params["wn3"]], axis=1)  # (64, 64)
    f1 = w1s.shape[1] // 2
    f2 = w2s.shape[1] // 2
    f3 = w3s.shape[1] // 2

    num_classes = params["w_lin"].shape[1]
    out_shape = jax.ShapeDtypeStruct((num_graphs, num_classes), jnp.float32)

    args = (dst_row, src_col, batch_row, x,
            w1s, params["g1"], params["be1"],
            w2s, params["g2"], params["be2"],
            w3s, params["b3"],
            params["w_lin"], params["b_lin"])

    # Advisory cost estimate (includes the in-kernel A construction matmul).
    flops = 2 * (n * n * (e_pad + f1 + f2 + f3)
                 + n * (f_in * 2 * f1 + f1 * 2 * f2 + f2 * 2 * f3)
                 + num_graphs * n * f3
                 + num_graphs * f3 * num_classes)
    bytes_accessed = int(sum(a.size * a.dtype.itemsize for a in args)
                         + num_graphs * num_classes * 4)
    cost = pl.CostEstimate(flops=flops,
                           transcendentals=num_graphs * (num_classes + 1) + f1 + f2,
                           bytes_accessed=bytes_accessed)

    vmem = pl.BlockSpec(memory_space=pltpu.MemorySpace.VMEM)
    return pl.pallas_call(
        _gnn_kernel,
        out_shape=out_shape,
        in_specs=[vmem] * len(args),
        out_specs=vmem,
        cost_estimate=cost,
        # 32 MiB is safe headroom on v7x's 64 MiB VMEM and plenty for v5e/v6e
        # at this size.  TODO(synk): at N beyond a few thousand nodes, switch
        # to a row-tiled grid over A (dimension_semantics=("parallel",) to use
        # both v7x TensorCores, two-phase BN reduction), raise the limit to
        # ~96 MiB on v5e/v6e before tiling, and build A per-tile from the
        # edge list instead of densely.
        compiler_params=pltpu.CompilerParams(vmem_limit_bytes=32 * 1024 * 1024),
    )(*args)


# ------------------------- Reference (pure JAX) ------------------------------

def reference_forward(x, edge_index, batch, params, num_graphs):
    n = x.shape[0]
    src, dst = edge_index[0], edge_index[1]
    A = jnp.zeros((n, n), jnp.float32).at[dst, src].add(1.0)
    onehot = (batch[None, :] == jnp.arange(num_graphs)[:, None]).astype(jnp.float32)
    P = onehot / jnp.maximum(jnp.sum(onehot, axis=1, keepdims=True), 1.0)

    def gc(h, wr, wn, b):
        return h @ wr + (A @ h) @ wn + b

    def bn(h, g, be):
        mean = jnp.mean(h, axis=0, keepdims=True)
        var = jnp.mean((h - mean) ** 2, axis=0, keepdims=True)
        return (h - mean) / jnp.sqrt(var + 1e-5) * g + be

    h = jax.nn.relu(bn(gc(x, params["wr1"], params["wn1"], params["b1"]),
                       params["g1"], params["be1"]))
    h = jax.nn.relu(bn(gc(h, params["wr2"], params["wn2"], params["b2"]),
                       params["g2"], params["be2"]))
    h = jax.nn.relu(gc(h, params["wr3"], params["wn3"], params["b3"]))
    pooled = P @ h
    logits = pooled @ params["w_lin"] + params["b_lin"]
    return jax.nn.log_softmax(logits, axis=-1)


# --------------------------------- main ---------------------------------------

def init_params(key, num_features, num_classes):
    dims = [(num_features, 128), (128, 64), (64, 32)]
    params = {}
    keys = jax.random.split(key, 16)
    ki = iter(range(16))

    for layer, (fin, fout) in enumerate(dims, start=1):
        scale = 1.0 / jnp.sqrt(jnp.float32(fin))
        params[f"wr{layer}"] = (jax.random.normal(keys[next(ki)], (fin, fout),
                                                  jnp.float32) * scale)
        params[f"wn{layer}"] = (jax.random.normal(keys[next(ki)], (fin, fout),
                                                  jnp.float32) * scale)
        params[f"b{layer}"] = (jax.random.normal(keys[next(ki)], (1, fout),
                                                 jnp.float32) * 0.01)
        if layer < 3:
            params[f"g{layer}"] = jnp.ones((1, fout), jnp.float32)
            params[f"be{layer}"] = jnp.zeros((1, fout), jnp.float32)

    scale = 1.0 / jnp.sqrt(jnp.float32(32))
    params["w_lin"] = (jax.random.normal(keys[next(ki)], (32, num_classes),
                                         jnp.float32) * scale)
    params["b_lin"] = (jax.random.normal(keys[next(ki)], (1, num_classes),
                                         jnp.float32) * 0.01)
    return params


if __name__ == "__main__":
    num_features = 16
    num_classes = 8
    num_nodes = 64
    num_graphs = 2

    key = jax.random.PRNGKey(0)
    k_x, k_e, k_p = jax.random.split(key, 3)

    # Node features.
    x = jax.random.normal(k_x, (num_nodes, num_features), jnp.float32)

    # Two graphs of 32 nodes each: ring edges within each graph + a few random.
    nodes_per_graph = num_nodes // num_graphs
    batch = jnp.repeat(jnp.arange(num_graphs, dtype=jnp.int32), nodes_per_graph)

    ring_src, ring_dst = [], []
    for g in range(num_graphs):
        base = g * nodes_per_graph
        for i in range(nodes_per_graph):
            ring_src.append(base + i)
            ring_dst.append(base + (i + 1) % nodes_per_graph)
    rnd_src = jax.random.randint(k_e, (32,), 0, nodes_per_graph)
    rnd_dst = jax.random.randint(jax.random.fold_in(k_e, 1), (32,), 0,
                                 nodes_per_graph)
    rnd_off = jax.random.randint(jax.random.fold_in(k_e, 2), (32,), 0,
                                 num_graphs) * nodes_per_graph
    edge_index = jnp.stack([
        jnp.concatenate([jnp.array(ring_src, jnp.int32), rnd_src + rnd_off]),
        jnp.concatenate([jnp.array(ring_dst, jnp.int32), rnd_dst + rnd_off]),
    ])

    params = init_params(k_p, num_features, num_classes)

    out = captcha_gnn_forward(x, edge_index, batch, params,
                              num_graphs=num_graphs)
    out = jax.block_until_ready(out)

    ref = reference_forward(x, edge_index, batch, params, num_graphs)
    assert out.shape == (num_graphs, num_classes)
    assert jnp.allclose(out, ref, atol=1e-4, rtol=1e-4), (out, ref)

    print("KERNEL_OK")
</pallas_src>

<mosaic_0001>
module attributes {stable_mosaic.version = 11 : i64} {
  func.func @_gnn_kernel(%arg0: memref<1x128xi32, #tpu.memory_space<vmem>>, %arg1: memref<128x1xi32, #tpu.memory_space<vmem>>, %arg2: memref<1x64xi32, #tpu.memory_space<vmem>>, %arg3: memref<64x16xf32, #tpu.memory_space<vmem>>, %arg4: memref<16x256xf32, #tpu.memory_space<vmem>>, %arg5: memref<1x128xf32, #tpu.memory_space<vmem>>, %arg6: memref<1x128xf32, #tpu.memory_space<vmem>>, %arg7: memref<128x128xf32, #tpu.memory_space<vmem>>, %arg8: memref<1x64xf32, #tpu.memory_space<vmem>>, %arg9: memref<1x64xf32, #tpu.memory_space<vmem>>, %arg10: memref<64x64xf32, #tpu.memory_space<vmem>>, %arg11: memref<1x32xf32, #tpu.memory_space<vmem>>, %arg12: memref<32x8xf32, #tpu.memory_space<vmem>>, %arg13: memref<1x8xf32, #tpu.memory_space<vmem>>, %arg14: memref<2x8xf32, #tpu.memory_space<vmem>>) attributes {dimension_semantics = [], scalar_prefetch = 0 : i64, scratch_operands = 0 : i64, tpu.core_type = #tpu.core_type<tc>} {
    %c0 = arith.constant 0 : index
    %c0_0 = arith.constant 0 : index
    %0 = vector.load %arg3[%c0, %c0_0] : memref<64x16xf32, #tpu.memory_space<vmem>>, vector<64x16xf32>
    %1 = tpu.iota {dimensions = array<i32: 0>} : vector<64x128xi32>
    %c0_1 = arith.constant 0 : index
    %c0_2 = arith.constant 0 : index
    %2 = vector.load %arg0[%c0_1, %c0_2] : memref<1x128xi32, #tpu.memory_space<vmem>>, vector<1x128xi32>
    %3 = vector.broadcast %2 : vector<1x128xi32> to vector<64x128xi32>
    %4 = arith.cmpi eq, %1, %3 : vector<64x128xi32>
    %5 = arith.extui %4 : vector<64x128xi1> to vector<64x128xi32>
    %6 = arith.sitofp %5 : vector<64x128xi32> to vector<64x128xf32>
    %7 = tpu.iota {dimensions = array<i32: 1>} : vector<128x64xi32>
    %c0_3 = arith.constant 0 : index
    %c0_4 = arith.constant 0 : index
    %8 = vector.load %arg1[%c0_3, %c0_4] : memref<128x1xi32, #tpu.memory_space<vmem>>, vector<128x1xi32>
    %9 = vector.broadcast %8 : vector<128x1xi32> to vector<128x64xi32>
    %10 = arith.cmpi eq, %7, %9 : vector<128x64xi32>
    %11 = arith.extui %10 : vector<128x64xi1> to vector<128x64xi32>
    %12 = arith.sitofp %11 : vector<128x64xi32> to vector<128x64xf32>
    %cst = arith.constant dense<0.000000e+00> : vector<64x64xf32>
    %13 = tpu.matmul %6, %12, %cst {dimension_numbers = #tpu.dot_dimension_numbers<[1], [0], [0], [1], [0, 0, 1, 1], [], []>} : vector<64x128xf32>, vector<128x64xf32>, vector<64x64xf32> -> vector<64x64xf32>
    %14 = tpu.iota {dimensions = array<i32: 0>} : vector<2x64xi32>
    %c0_5 = arith.constant 0 : index
    %c0_6 = arith.constant 0 : index
    %15 = vector.load %arg2[%c0_5, %c0_6] : memref<1x64xi32, #tpu.memory_space<vmem>>, vector<1x64xi32>
    %16 = vector.broadcast %15 : vector<1x64xi32> to vector<2x64xi32>
    %17 = arith.cmpi eq, %14, %16 : vector<2x64xi32>
    %18 = arith.extui %17 : vector<2x64xi1> to vector<2x64xi32>
    %19 = arith.sitofp %18 : vector<2x64xi32> to vector<2x64xf32>
    %cst_7 = arith.constant dense<0.000000e+00> : vector<2xf32>
    %20 = vector.multi_reduction <add>, %19, %cst_7 [1] : vector<2x64xf32> to vector<2xf32>
    %21 = vector.shape_cast %20 : vector<2xf32> to vector<2x1xf32>
    %cst_8 = arith.constant 1.000000e+00 : f32
    %22 = vector.broadcast %cst_8 : f32 to vector<2x1xf32>
    %23 = arith.maximumf %21, %22 : vector<2x1xf32>
    %24 = vector.broadcast %23 : vector<2x1xf32> to vector<2x64xf32>
    %25 = arith.divf %19, %24 : vector<2x64xf32>
    %c0_9 = arith.constant 0 : index
    %c0_10 = arith.constant 0 : index
    %26 = vector.load %arg4[%c0_9, %c0_10] : memref<16x256xf32, #tpu.memory_space<vmem>>, vector<16x256xf32>
    %cst_11 = arith.constant dense<0.000000e+00> : vector<64x256xf32>
    %27 = tpu.matmul %0, %26, %cst_11 {dimension_numbers = #tpu.dot_dimension_numbers<[1], [0], [0], [1], [0, 0, 1, 1], [], []>} : vector<64x16xf32>, vector<16x256xf32>, vector<64x256xf32> -> vector<64x256xf32>
    %28 = vector.extract_strided_slice %27 {offsets = [0, 0], sizes = [64, 128], strides = [1, 1]} : vector<64x256xf32> to vector<64x128xf32>
    %29 = vector.extract_strided_slice %27 {offsets = [0, 128], sizes = [64, 128], strides = [1, 1]} : vector<64x256xf32> to vector<64x128xf32>
    %cst_12 = arith.constant dense<0.000000e+00> : vector<64x128xf32>
    %30 = tpu.matmul %13, %29, %cst_12 {dimension_numbers = #tpu.dot_dimension_numbers<[1], [0], [0], [1], [0, 0, 1, 1], [], []>} : vector<64x64xf32>, vector<64x128xf32>, vector<64x128xf32> -> vector<64x128xf32>
    %31 = arith.addf %28, %30 : vector<64x128xf32>
    %cst_13 = arith.constant dense<0.000000e+00> : vector<128xf32>
    %32 = vector.multi_reduction <add>, %31, %cst_13 [0] : vector<64x128xf32> to vector<128xf32>
    %33 = vector.shape_cast %32 : vector<128xf32> to vector<1x128xf32>
    %cst_14 = arith.constant 6.400000e+01 : f32
    %34 = vector.broadcast %cst_14 : f32 to vector<1x128xf32>
    %35 = arith.divf %33, %34 : vector<1x128xf32>
    %36 = arith.mulf %31, %31 : vector<64x128xf32>
    %cst_15 = arith.constant dense<0.000000e+00> : vector<128xf32>
    %37 = vector.multi_reduction <add>, %36, %cst_15 [0] : vector<64x128xf32> to vector<128xf32>
    %38 = vector.shape_cast %37 : vector<128xf32> to vector<1x128xf32>
    %cst_16 = arith.constant 6.400000e+01 : f32
    %39 = vector.broadcast %cst_16 : f32 to vector<1x128xf32>
    %40 = arith.divf %38, %39 : vector<1x128xf32>
    %41 = arith.mulf %35, %35 : vector<1x128xf32>
    %42 = arith.subf %40, %41 : vector<1x128xf32>
    %cst_17 = arith.constant 0.000000e+00 : f32
    %43 = vector.broadcast %cst_17 : f32 to vector<1x128xf32>
    %44 = arith.maximumf %42, %43 : vector<1x128xf32>
    %cst_18 = arith.constant 9.99999974E-6 : f32
    %45 = vector.broadcast %cst_18 : f32 to vector<1x128xf32>
    %46 = arith.addf %44, %45 : vector<1x128xf32>
    %47 = math.rsqrt %46 : vector<1x128xf32>
    %c0_19 = arith.constant 0 : index
    %c0_20 = arith.constant 0 : index
    %48 = vector.load %arg5[%c0_19, %c0_20] : memref<1x128xf32, #tpu.memory_space<vmem>>, vector<1x128xf32>
    %49 = arith.mulf %47, %48 : vector<1x128xf32>
    %c0_21 = arith.constant 0 : index
    %c0_22 = arith.constant 0 : index
    %50 = vector.load %arg6[%c0_21, %c0_22] : memref<1x128xf32, #tpu.memory_space<vmem>>, vector<1x128xf32>
    %51 = arith.mulf %35, %49 : vector<1x128xf32>
    %52 = arith.subf %50, %51 : vector<1x128xf32>
    %53 = vector.broadcast %49 : vector<1x128xf32> to vector<64x128xf32>
    %54 = arith.mulf %31, %53 : vector<64x128xf32>
    %55 = vector.broadcast %52 : vector<1x128xf32> to vector<64x128xf32>
    %56 = arith.addf %54, %55 : vector<64x128xf32>
    %cst_23 = arith.constant 0.000000e+00 : f32
    %57 = vector.broadcast %cst_23 : f32 to vector<64x128xf32>
    %58 = arith.maximumf %56, %57 : vector<64x128xf32>
    %c0_24 = arith.constant 0 : index
    %c0_25 = arith.constant 0 : index
    %59 = vector.load %arg7[%c0_24, %c0_25] : memref<128x128xf32, #tpu.memory_space<vmem>>, vector<128x128xf32>
    %cst_26 = arith.constant dense<0.000000e+00> : vector<64x128xf32>
    %60 = tpu.matmul %58, %59, %cst_26 {dimension_numbers = #tpu.dot_dimension_numbers<[1], [0], [0], [1], [0, 0, 1, 1], [], []>} : vector<64x128xf32>, vector<128x128xf32>, vector<64x128xf32> -> vector<64x128xf32>
    %61 = vector.extract_strided_slice %60 {offsets = [0, 0], sizes = [64, 64], strides = [1, 1]} : vector<64x128xf32> to vector<64x64xf32>
    %62 = vector.extract_strided_slice %60 {offsets = [0, 64], sizes = [64, 64], strides = [1, 1]} : vector<64x128xf32> to vector<64x64xf32>
    %cst_27 = arith.constant dense<0.000000e+00> : vector<64x64xf32>
    %63 = tpu.matmul %13, %62, %cst_27 {dimension_numbers = #tpu.dot_dimension_numbers<[1], [0], [0], [1], [0, 0, 1, 1], [], []>} : vector<64x64xf32>, vector<64x64xf32>, vector<64x64xf32> -> vector<64x64xf32>
    %64 = arith.addf %61, %63 : vector<64x64xf32>
    %cst_28 = arith.constant dense<0.000000e+00> : vector<64xf32>
    %65 = vector.multi_reduction <add>, %64, %cst_28 [0] : vector<64x64xf32> to vector<64xf32>
    %66 = vector.shape_cast %65 : vector<64xf32> to vector<1x64xf32>
    %cst_29 = arith.constant 6.400000e+01 : f32
    %67 = vector.broadcast %cst_29 : f32 to vector<1x64xf32>
    %68 = arith.divf %66, %67 : vector<1x64xf32>
    %69 = arith.mulf %64, %64 : vector<64x64xf32>
    %cst_30 = arith.constant dense<0.000000e+00> : vector<64xf32>
    %70 = vector.multi_reduction <add>, %69, %cst_30 [0] : vector<64x64xf32> to vector<64xf32>
    %71 = vector.shape_cast %70 : vector<64xf32> to vector<1x64xf32>
    %cst_31 = arith.constant 6.400000e+01 : f32
    %72 = vector.broadcast %cst_31 : f32 to vector<1x64xf32>
    %73 = arith.divf %71, %72 : vector<1x64xf32>
    %74 = arith.mulf %68, %68 : vector<1x64xf32>
    %75 = arith.subf %73, %74 : vector<1x64xf32>
    %cst_32 = arith.constant 0.000000e+00 : f32
    %76 = vector.broadcast %cst_32 : f32 to vector<1x64xf32>
    %77 = arith.maximumf %75, %76 : vector<1x64xf32>
    %cst_33 = arith.constant 9.99999974E-6 : f32
    %78 = vector.broadcast %cst_33 : f32 to vector<1x64xf32>
    %79 = arith.addf %77, %78 : vector<1x64xf32>
    %80 = math.rsqrt %79 : vector<1x64xf32>
    %c0_34 = arith.constant 0 : index
    %c0_35 = arith.constant 0 : index
    %81 = vector.load %arg8[%c0_34, %c0_35] : memref<1x64xf32, #tpu.memory_space<vmem>>, vector<1x64xf32>
    %82 = arith.mulf %80, %81 : vector<1x64xf32>
    %c0_36 = arith.constant 0 : index
    %c0_37 = arith.constant 0 : index
    %83 = vector.load %arg9[%c0_36, %c0_37] : memref<1x64xf32, #tpu.memory_space<vmem>>, vector<1x64xf32>
    %84 = arith.mulf %68, %82 : vector<1x64xf32>
    %85 = arith.subf %83, %84 : vector<1x64xf32>
    %86 = vector.broadcast %82 : vector<1x64xf32> to vector<64x64xf32>
    %87 = arith.mulf %64, %86 : vector<64x64xf32>
    %88 = vector.broadcast %85 : vector<1x64xf32> to vector<64x64xf32>
    %89 = arith.addf %87, %88 : vector<64x64xf32>
    %cst_38 = arith.constant 0.000000e+00 : f32
    %90 = vector.broadcast %cst_38 : f32 to vector<64x64xf32>
    %91 = arith.maximumf %89, %90 : vector<64x64xf32>
    %c0_39 = arith.constant 0 : index
    %c0_40 = arith.constant 0 : index
    %92 = vector.load %arg10[%c0_39, %c0_40] : memref<64x64xf32, #tpu.memory_space<vmem>>, vector<64x64xf32>
    %cst_41 = arith.constant dense<0.000000e+00> : vector<64x64xf32>
    %93 = tpu.matmul %91, %92, %cst_41 {dimension_numbers = #tpu.dot_dimension_numbers<[1], [0], [0], [1], [0, 0, 1, 1], [], []>} : vector<64x64xf32>, vector<64x64xf32>, vector<64x64xf32> -> vector<64x64xf32>
    %94 = vector.extract_strided_slice %93 {offsets = [0, 0], sizes = [64, 32], strides = [1, 1]} : vector<64x64xf32> to vector<64x32xf32>
    %95 = vector.extract_strided_slice %93 {offsets = [0, 32], sizes = [64, 32], strides = [1, 1]} : vector<64x64xf32> to vector<64x32xf32>
    %cst_42 = arith.constant dense<0.000000e+00> : vector<64x32xf32>
    %96 = tpu.matmul %13, %95, %cst_42 {dimension_numbers = #tpu.dot_dimension_numbers<[1], [0], [0], [1], [0, 0, 1, 1], [], []>} : vector<64x64xf32>, vector<64x32xf32>, vector<64x32xf32> -> vector<64x32xf32>
    %97 = arith.addf %94, %96 : vector<64x32xf32>
    %c0_43 = arith.constant 0 : index
    %c0_44 = arith.constant 0 : index
    %98 = vector.load %arg11[%c0_43, %c0_44] : memref<1x32xf32, #tpu.memory_space<vmem>>, vector<1x32xf32>
    %99 = vector.broadcast %98 : vector<1x32xf32> to vector<64x32xf32>
    %100 = arith.addf %97, %99 : vector<64x32xf32>
    %cst_45 = arith.constant 0.000000e+00 : f32
    %101 = vector.broadcast %cst_45 : f32 to vector<64x32xf32>
    %102 = arith.maximumf %100, %101 : vector<64x32xf32>
    %cst_46 = arith.constant dense<0.000000e+00> : vector<2x32xf32>
    %103 = tpu.matmul %25, %102, %cst_46 {dimension_numbers = #tpu.dot_dimension_numbers<[1], [0], [0], [1], [0, 0, 1, 1], [], []>} : vector<2x64xf32>, vector<64x32xf32>, vector<2x32xf32> -> vector<2x32xf32>
    %c0_47 = arith.constant 0 : index
    %c0_48 = arith.constant 0 : index
    %104 = vector.load %arg12[%c0_47, %c0_48] : memref<32x8xf32, #tpu.memory_space<vmem>>, vector<32x8xf32>
    %cst_49 = arith.constant dense<0.000000e+00> : vector<2x8xf32>
    %105 = tpu.matmul %103, %104, %cst_49 {dimension_numbers = #tpu.dot_dimension_numbers<[1], [0], [0], [1], [0, 0, 1, 1], [], []>} : vector<2x32xf32>, vector<32x8xf32>, vector<2x8xf32> -> vector<2x8xf32>
    %c0_50 = arith.constant 0 : index
    %c0_51 = arith.constant 0 : index
    %106 = vector.load %arg13[%c0_50, %c0_51] : memref<1x8xf32, #tpu.memory_space<vmem>>, vector<1x8xf32>
    %107 = vector.broadcast %106 : vector<1x8xf32> to vector<2x8xf32>
    %108 = arith.addf %105, %107 : vector<2x8xf32>
    %cst_52 = arith.constant dense<0xFF800000> : vector<2xf32>
    %109 = vector.multi_reduction <maximumf>, %108, %cst_52 [1] : vector<2x8xf32> to vector<2xf32>
    %110 = vector.shape_cast %109 : vector<2xf32> to vector<2x1xf32>
    %111 = vector.broadcast %110 : vector<2x1xf32> to vector<2x8xf32>
    %112 = arith.subf %108, %111 : vector<2x8xf32>
    %113 = math.exp %112 : vector<2x8xf32>
    %cst_53 = arith.constant dense<0.000000e+00> : vector<2xf32>
    %114 = vector.multi_reduction <add>, %113, %cst_53 [1] : vector<2x8xf32> to vector<2xf32>
    %115 = vector.shape_cast %114 : vector<2xf32> to vector<2x1xf32>
    %116 = math.log %115 : vector<2x1xf32>
    %117 = vector.broadcast %116 : vector<2x1xf32> to vector<2x8xf32>
    %118 = arith.subf %112, %117 : vector<2x8xf32>
    %c0_54 = arith.constant 0 : index
    %c0_55 = arith.constant 0 : index
    %119 = vector.load %arg14[%c0_54, %c0_55] : memref<2x8xf32, #tpu.memory_space<vmem>>, vector<2x8xf32>
    tpu.vector_store %arg14[%c0_54, %c0_55], %118 {strides = array<i32>} : memref<2x8xf32, #tpu.memory_space<vmem>>, vector<2x8xf32>,
    return
  }
}

</mosaic_0001>

<llo_original>
// kernel: captcha_gnn_forward.1
$region0: #{captcha_gnn_forward.1}
  #allocation0 [shape = 'u32[]', space=smem, size = 0x4, offset = 0x4, fixed_abs, tag = 'smem constant byte address 0x4 - core index']
  #allocation1 [shape = 'u32[72,128]{1,0:T(1,128)}', space=vmem, size = 0x9000, scoped, tag = 'internal scratch']
  %s0 = inlined_call_operand.vmem [shape: s32[1,128], index: 0, kind: input, shape index: {}]
  %s1 = inlined_call_operand.vmem [shape: s32[128,1], index: 1, kind: input, shape index: {}]
  %s2 = inlined_call_operand.vmem [shape: s32[1,64], index: 2, kind: input, shape index: {}]
  %s3 = inlined_call_operand.vmem [shape: f32[64,16], index: 3, kind: input, shape index: {}]
  %s4 = inlined_call_operand.vmem [shape: f32[16,256], index: 4, kind: input, shape index: {}]
  %s5 = inlined_call_operand.vmem [shape: f32[1,128], index: 5, kind: input, shape index: {}]
  %s6 = inlined_call_operand.vmem [shape: f32[1,128], index: 6, kind: input, shape index: {}]
  %s7 = inlined_call_operand.vmem [shape: f32[128,128], index: 7, kind: input, shape index: {}]
  %s8 = inlined_call_operand.vmem [shape: f32[1,64], index: 8, kind: input, shape index: {}]
  %s9 = inlined_call_operand.vmem [shape: f32[1,64], index: 9, kind: input, shape index: {}]
  %s10 = inlined_call_operand.vmem [shape: f32[64,64], index: 10, kind: input, shape index: {}]
  %s11 = inlined_call_operand.vmem [shape: f32[1,32], index: 11, kind: input, shape index: {}]
  %s12 = inlined_call_operand.vmem [shape: f32[32,8], index: 12, kind: input, shape index: {}]
  %s13 = inlined_call_operand.vmem [shape: f32[1,8], index: 13, kind: input, shape index: {}]
  %s14 = inlined_call_operand.hbm [shape: f32[2,8], index: 14, kind: output, shape index: {}]
  %s15 = sld [smem:[#allocation0]]
  $region66: #{captcha_gnn_forward.1} parent=0
    _
  %s17 = ssub.s32 1, %s15
  %s18 = scalar_select 0, %s17, %s15
  $region1: #{captcha_gnn_forward.1} parent=0
    #allocation2 [shape = 'u8[1024]{0}', space=vmem, size = 0x400, scoped, tag = 'output window, operand 0, single buffered']
    #allocation3 [shape = 's32[1]{0}', space=sflag, size = 0x4, scoped, tag = 'scoped memory for captcha_gnn_forward.1']
    %19 = vsyncpa [#allocation3], 0
    // Predicated region
    $region2: #{captcha_gnn_forward.1} parent=1 // pred_check
      _
    $region3: #{captcha_gnn_forward.1} parent=1 // pred_check_branch
      %21 = sbr.rel (0) target = $region5
    $region4: #{captcha_gnn_forward.1} parent=1 // pred_region
      _
    $region5: #{captcha_gnn_forward.1} parent=1 // pred_fallthru
      _
    // Predicated region
    $region6: #{captcha_gnn_forward.1} parent=1 // pred_check
      _
    $region7: #{captcha_gnn_forward.1} parent=1 // pred_check_branch
      %23 = sbr.rel (0) target = $region9
    $region8: #{captcha_gnn_forward.1} parent=1 // pred_region
      _
    $region9: #{captcha_gnn_forward.1} parent=1 // pred_fallthru
      _
    // Predicated region
    $region10: #{captcha_gnn_forward.1} parent=1 // pred_check
      _
    $region11: #{captcha_gnn_forward.1} parent=1 // pred_check_branch
      %25 = sbr.rel (0) target = $region13
    $region12: #{captcha_gnn_forward.1} parent=1 // pred_region
      _
    $region13: #{captcha_gnn_forward.1} parent=1 // pred_fallthru
      _
    // Predicated region
    $region14: #{captcha_gnn_forward.1} parent=1 // pred_check
      _
    $region15: #{captcha_gnn_forward.1} parent=1 // pred_check_branch
      %27 = sbr.rel (0) target = $region17
    $region16: #{captcha_gnn_forward.1} parent=1 // pred_region
      _
    $region17: #{captcha_gnn_forward.1} parent=1 // pred_fallthru
      _
    // Predicated region
    $region18: #{captcha_gnn_forward.1} parent=1 // pred_check
      _
    $region19: #{captcha_gnn_forward.1} parent=1 // pred_check_branch
      %29 = sbr.rel (0) target = $region21
    $region20: #{captcha_gnn_forward.1} parent=1 // pred_region
      _
    $region21: #{captcha_gnn_forward.1} parent=1 // pred_fallthru
      _
    // Predicated region
    $region22: #{captcha_gnn_forward.1} parent=1 // pred_check
      _
    $region23: #{captcha_gnn_forward.1} parent=1 // pred_check_branch
      %31 = sbr.rel (0) target = $region25
    $region24: #{captcha_gnn_forward.1} parent=1 // pred_region
      _
    $region25: #{captcha_gnn_forward.1} parent=1 // pred_fallthru
      _
    // Predicated region
    $region26: #{captcha_gnn_forward.1} parent=1 // pred_check
      _
    $region27: #{captcha_gnn_forward.1} parent=1 // pred_check_branch
      %33 = sbr.rel (0) target = $region29
    $region28: #{captcha_gnn_forward.1} parent=1 // pred_region
      _
    $region29: #{captcha_gnn_forward.1} parent=1 // pred_fallthru
      _
    // Predicated region
    $region30: #{captcha_gnn_forward.1} parent=1 // pred_check
      _
    $region31: #{captcha_gnn_forward.1} parent=1 // pred_check_branch
      %35 = sbr.rel (0) target = $region33
    $region32: #{captcha_gnn_forward.1} parent=1 // pred_region
      _
    $region33: #{captcha_gnn_forward.1} parent=1 // pred_fallthru
      _
    // Predicated region
    $region34: #{captcha_gnn_forward.1} parent=1 // pred_check
      _
    $region35: #{captcha_gnn_forward.1} parent=1 // pred_check_branch
      %37 = sbr.rel (0) target = $region37
    $region36: #{captcha_gnn_forward.1} parent=1 // pred_region
      _
    $region37: #{captcha_gnn_forward.1} parent=1 // pred_fallthru
      _
    // Predicated region
    $region38: #{captcha_gnn_forward.1} parent=1 // pred_check
      _
    $region39: #{captcha_gnn_forward.1} parent=1 // pred_check_branch
      %39 = sbr.rel (0) target = $region41
    $region40: #{captcha_gnn_forward.1} parent=1 // pred_region
      _
    $region41: #{captcha_gnn_forward.1} parent=1 // pred_fallthru
      _
    // Predicated region
    $region42: #{captcha_gnn_forward.1} parent=1 // pred_check
      _
    $region43: #{captcha_gnn_forward.1} parent=1 // pred_check_branch
      %41 = sbr.rel (0) target = $region45
    $region44: #{captcha_gnn_forward.1} parent=1 // pred_region
      _
    $region45: #{captcha_gnn_forward.1} parent=1 // pred_fallthru
      _
    // Predicated region
    $region46: #{captcha_gnn_forward.1} parent=1 // pred_check
      _
    $region47: #{captcha_gnn_forward.1} parent=1 // pred_check_branch
      %43 = sbr.rel (0) target = $region49
    $region48: #{captcha_gnn_forward.1} parent=1 // pred_region
      _
    $region49: #{captcha_gnn_forward.1} parent=1 // pred_fallthru
      _
    // Predicated region
    $region50: #{captcha_gnn_forward.1} parent=1 // pred_check
      _
    $region51: #{captcha_gnn_forward.1} parent=1 // pred_check_branch
      %45 = sbr.rel (0) target = $region53
    $region52: #{captcha_gnn_forward.1} parent=1 // pred_region
      _
    $region53: #{captcha_gnn_forward.1} parent=1 // pred_fallthru
      _
    // Predicated region
    $region54: #{captcha_gnn_forward.1} parent=1 // pred_check
      _
    $region55: #{captcha_gnn_forward.1} parent=1 // pred_check_branch
      %47 = sbr.rel (0) target = $region57
    $region56: #{captcha_gnn_forward.1} parent=1 // pred_region
      _
    $region57: #{captcha_gnn_forward.1} parent=1 // pred_fallthru
      _
    %v48 = vld [vmem:[%s3] sm:$0xff]
    %v49 = vld [vmem:[%s3 + $0x8] sm:$0xff]
    %v50 = vld [vmem:[%s3 + $0x10] sm:$0xff]
    %v51 = vld [vmem:[%s3 + $0x18] sm:$0xff]
    %v52 = vld [vmem:[%s3 + $0x20] sm:$0xff]
    %v53 = vld [vmem:[%s3 + $0x28] sm:$0xff]
    %v54 = vld [vmem:[%s3 + $0x30] sm:$0xff]
    %v55 = vld [vmem:[%s3 + $0x38] sm:$0xff]
    %v56 = vlaneseq
    %v57 = vshrl.u32 %v56, 7
    %v58 = vadd.s32 %v57, 8
    %v59 = vadd.s32 %v57, 16
    %v60 = vadd.s32 %v57, 24
    %v61 = vadd.s32 %v57, 32
    %v62 = vadd.s32 %v57, 40
    %v63 = vadd.s32 %v57, 48
    %v64 = vadd.s32 %v57, 56
    %v65 = vld [vmem:[%s0] sm:$0x1]
    %v66 = vperm.slane %v65, 0
    %vm67 = vcmp.eq.s32.totalorder %v57, %v66
    %vm68 = vcmp.eq.s32.totalorder %v58, %v66
    %vm69 = vcmp.eq.s32.totalorder %v59, %v66
    %vm70 = vcmp.eq.s32.totalorder %v60, %v66
    %vm71 = vcmp.eq.s32.totalorder %v61, %v66
    %vm72 = vcmp.eq.s32.totalorder %v62, %v66
    %vm73 = vcmp.eq.s32.totalorder %v63, %v66
    %vm74 = vcmp.eq.s32.totalorder %v64, %v66
    %v75 = vsel %vm67, 1, 0
    %v76 = vsel %vm68, 1, 0
    %v77 = vsel %vm69, 1, 0
    %v78 = vsel %vm70, 1, 0
    %v79 = vsel %vm71, 1, 0
    %v80 = vsel %vm72, 1, 0
    %v81 = vsel %vm73, 1, 0
    %v82 = vsel %vm74, 1, 0
    %v83 = vcvt.s32.f32 %v75
    %v84 = vcvt.s32.f32 %v76
    %v85 = vcvt.s32.f32 %v77
    %v86 = vcvt.s32.f32 %v78
    %v87 = vcvt.s32.f32 %v79
    %v88 = vcvt.s32.f32 %v80
    %v89 = vcvt.s32.f32 %v81
    %v90 = vcvt.s32.f32 %v82
    %v91 = vlaneseq
    %v92 = vand.u32 %v91, 127
    %v93 = vld [vmem:[%s1] sm:$0xff]
    %v94 = vld [vmem:[%s1 + $0x8] sm:$0xff]
    %v95 = vld [vmem:[%s1 + $0x10] sm:$0xff]
    %v96 = vld [vmem:[%s1 + $0x18] sm:$0xff]
    %v97 = vld [vmem:[%s1 + $0x20] sm:$0xff]
    %v98 = vld [vmem:[%s1 + $0x28] sm:$0xff]
    %v99 = vld [vmem:[%s1 + $0x30] sm:$0xff]
    %v100 = vld [vmem:[%s1 + $0x38] sm:$0xff]
    %v101 = vld [vmem:[%s1 + $0x40] sm:$0xff]
    %v102 = vld [vmem:[%s1 + $0x48] sm:$0xff]
    %v103 = vld [vmem:[%s1 + $0x50] sm:$0xff]
    %v104 = vld [vmem:[%s1 + $0x58] sm:$0xff]
    %v105 = vld [vmem:[%s1 + $0x60] sm:$0xff]
    %v106 = vld [vmem:[%s1 + $0x68] sm:$0xff]
    %v107 = vld [vmem:[%s1 + $0x70] sm:$0xff]
    %v108 = vld [vmem:[%s1 + $0x78] sm:$0xff]
    %109 = vset.pattern.permute.xlu0 0
    %110 = vperm.xlu0 %109, %v93
    %v111 = vpop.permute.xlu0 %110
    %112 = vset.pattern.permute.xlu0 0
    %113 = vperm.xlu0 %112, %v94
    %v114 = vpop.permute.xlu0 %113
    %115 = vset.pattern.permute.xlu0 0
    %116 = vperm.xlu0 %115, %v95
    %v117 = vpop.permute.xlu0 %116
    %118 = vset.pattern.permute.xlu0 0
    %119 = vperm.xlu0 %118, %v96
    %v120 = vpop.permute.xlu0 %119
    %121 = vset.pattern.permute.xlu0 0
    %122 = vperm.xlu0 %121, %v97
    %v123 = vpop.permute.xlu0 %122
    %124 = vset.pattern.permute.xlu0 0
    %125 = vperm.xlu0 %124, %v98
    %v126 = vpop.permute.xlu0 %125
    %127 = vset.pattern.permute.xlu0 0
    %128 = vperm.xlu0 %127, %v99
    %v129 = vpop.permute.xlu0 %128
    %130 = vset.pattern.permute.xlu0 0
    %131 = vperm.xlu0 %130, %v100
    %v132 = vpop.permute.xlu0 %131
    %133 = vset.pattern.permute.xlu0 0
    %134 = vperm.xlu0 %133, %v101
    %v135 = vpop.permute.xlu0 %134
    %136 = vset.pattern.permute.xlu0 0
    %137 = vperm.xlu0 %136, %v102
    %v138 = vpop.permute.xlu0 %137
    %139 = vset.pattern.permute.xlu0 0
    %140 = vperm.xlu0 %139, %v103
    %v141 = vpop.permute.xlu0 %140
    %142 = vset.pattern.permute.xlu0 0
    %143 = vperm.xlu0 %142, %v104
    %v144 = vpop.permute.xlu0 %143
    %145 = vset.pattern.permute.xlu0 0
    %146 = vperm.xlu0 %145, %v105
    %v147 = vpop.permute.xlu0 %146
    %148 = vset.pattern.permute.xlu0 0
    %149 = vperm.xlu0 %148, %v106
    %v150 = vpop.permute.xlu0 %149
    %151 = vset.pattern.permute.xlu0 0
    %152 = vperm.xlu0 %151, %v107
    %v153 = vpop.permute.xlu0 %152
    %154 = vset.pattern.permute.xlu0 0
    %155 = vperm.xlu0 %154, %v108
    %v156 = vpop.permute.xlu0 %155
    %vm157 = vcmp.eq.s32.totalorder %v92, %v111
    %vm158 = vcmp.eq.s32.totalorder %v92, %v114
    %vm159 = vcmp.eq.s32.totalorder %v92, %v117
    %vm160 = vcmp.eq.s32.totalorder %v92, %v120
    %vm161 = vcmp.eq.s32.totalorder %v92, %v123
    %vm162 = vcmp.eq.s32.totalorder %v92, %v126
    %vm163 = vcmp.eq.s32.totalorder %v92, %v129
    %vm164 = vcmp.eq.s32.totalorder %v92, %v132
    %vm165 = vcmp.eq.s32.totalorder %v92, %v135
    %vm166 = vcmp.eq.s32.totalorder %v92, %v138
    %vm167 = vcmp.eq.s32.totalorder %v92, %v141
    %vm168 = vcmp.eq.s32.totalorder %v92, %v144
    %vm169 = vcmp.eq.s32.totalorder %v92, %v147
    %vm170 = vcmp.eq.s32.totalorder %v92, %v150
    %vm171 = vcmp.eq.s32.totalorder %v92, %v153
    %vm172 = vcmp.eq.s32.totalorder %v92, %v156
    %v173 = vsel %vm157, 1, 0
    %v174 = vsel %vm158, 1, 0
    %v175 = vsel %vm159, 1, 0
    %v176 = vsel %vm160, 1, 0
    %v177 = vsel %vm161, 1, 0
    %v178 = vsel %vm162, 1, 0
    %v179 = vsel %vm163, 1, 0
    %v180 = vsel %vm164, 1, 0
    %v181 = vsel %vm165, 1, 0
    %v182 = vsel %vm166, 1, 0
    %v183 = vsel %vm167, 1, 0
    %v184 = vsel %vm168, 1, 0
    %v185 = vsel %vm169, 1, 0
    %v186 = vsel %vm170, 1, 0
    %v187 = vsel %vm171, 1, 0
    %v188 = vsel %vm172, 1, 0
    %v189 = vcvt.s32.f32 %v173
    %v190 = vcvt.s32.f32 %v174
    %v191 = vcvt.s32.f32 %v175
    %v192 = vcvt.s32.f32 %v176
    %v193 = vcvt.s32.f32 %v177
    %v194 = vcvt.s32.f32 %v178
    %v195 = vcvt.s32.f32 %v179
    %v196 = vcvt.s32.f32 %v180
    %v197 = vcvt.s32.f32 %v181
    %v198 = vcvt.s32.f32 %v182
    %v199 = vcvt.s32.f32 %v183
    %v200 = vcvt.s32.f32 %v184
    %v201 = vcvt.s32.f32 %v185
    %v202 = vcvt.s32.f32 %v186
    %v203 = vcvt.s32.f32 %v187
    %v204 = vcvt.s32.f32 %v188
    %205 = vmatpush.msra.mxu0 %v204
    %206 = vmatpush.msra.mxu0 %v203
    %207 = vmatpush.msra.mxu0 %v202
    %208 = vmatpush.msra.mxu0 %v201
    %209 = vmatpush.msra.mxu0 %v200
    %210 = vmatpush.msra.mxu0 %v199
    %211 = vmatpush.msra.mxu0 %v198
    %212 = vmatpush.msra.mxu0 %v197
    %213 = vmatpush.msra.mxu0 %v196
    %214 = vmatpush.msra.mxu0 %v195
    %215 = vmatpush.msra.mxu0 %v194
    %216 = vmatpush.msra.mxu0 %v193
    %217 = vmatpush.msra.mxu0 %v192
    %218 = vmatpush.msra.mxu0 %v191
    %219 = vmatpush.msra.mxu0 %v190
    %220 = vmatpush.msra.mxu0 %v189
    %221 = vmatmul.f32.gmra.mxu0 %v83
    %v222 = vpop.f32.mrf.mxu0
    %v223 = vadd.f32 0.0, %v222
    %224 = vmatmul.f32.gmra.mxu0 %v84
    %v225 = vpop.f32.mrf.mxu0
    %v226 = vadd.f32 0.0, %v225
    %227 = vmatmul.f32.gmra.mxu0 %v85
    %v228 = vpop.f32.mrf.mxu0
    %v229 = vadd.f32 0.0, %v228
    %230 = vmatmul.f32.gmra.mxu0 %v86
    %v231 = vpop.f32.mrf.mxu0
    %v232 = vadd.f32 0.0, %v231
    %233 = vmatmul.f32.gmra.mxu0 %v87
    %v234 = vpop.f32.mrf.mxu0
    %v235 = vadd.f32 0.0, %v234
    %236 = vmatmul.f32.gmra.mxu0 %v88
    %v237 = vpop.f32.mrf.mxu0
    %v238 = vadd.f32 0.0, %v237
    %239 = vmatmul.f32.gmra.mxu0 %v89
    %v240 = vpop.f32.mrf.mxu0
    %v241 = vadd.f32 0.0, %v240
    %242 = vmatmul.f32.gmra.mxu0 %v90
    %v243 = vpop.f32.mrf.mxu0
    %v244 = vadd.f32 0.0, %v243
    %245 = vdwg.mxu0
    %v246 = vld [vmem:[%s2] sm:$0x1]
    %v247 = vperm.slane %v246, 0
    %vm248 = vcmp.eq.s32.totalorder %v57, %v247
    %v249 = vsel %vm248, 1, 0
    %v250 = vcvt.s32.f32 %v249
    %vm251 = vcmask 517120
    %v252 = vsel %vm251, %v250, 0.0
    %253 = vadd.xlane.f32.xlu0 %v252
    %v254 = vpop.xlane.xlu0 %253
    %v255 = vmax.f32 %v254, 1.0
    %v256 = vrcp.pop %v255
    %v257 = vmul.f32 %v255, %v256
    %v258 = vsub.f32 1.0, %v257
    %v259 = vmul.f32 %v256, %v258
    %v260 = vadd.f32 %v256, %v259
    %vm261 = vweird.f32 %v255
    %vm262 = vweird.f32 %v256
    %vm263 = vmor %vm261, %vm262
    %v264 = vsel %vm263, %v256, %v260
    %v265 = vand.u32 2147483647, %v255
    %vm266 = vcmp.eq.f32.partialorder %v265, 8.507059e+37
    %v267 = vand.u32 %v255, 2147483648
    %v268 = vor.u32 1.1754944e-38, %v267
    %v269 = vsel %vm266, %v268, %v264
    %v270 = vmul.f32 %v250, %v269
    %v271 = vld [vmem:[%s4] sm:$0xff]
    %v272 = vld [vmem:[%s4 + $0x8] sm:$0xff]
    %v273 = vld [vmem:[%s4 + $0x10] sm:$0xff]
    %v274 = vld [vmem:[%s4 + $0x18] sm:$0xff]
    %vm275 = vcmask 130048
    %v277 = vsel %vm275, %v48, 0
    %v280 = vsel %vm275, %v49, 0
    %v283 = vsel %vm275, %v50, 0
    %v286 = vsel %vm275, %v51, 0
    %v289 = vsel %vm275, %v52, 0
    %v292 = vsel %vm275, %v53, 0
    %v295 = vsel %vm275, %v54, 0
    %v298 = vsel %vm275, %v55, 0
    %300 = vmatpush.msra.mxu0 0.0
    %301 = vmatpush.msra.mxu0 0.0
    %302 = vmatpush.msra.mxu0 0.0
    %303 = vmatpush.msra.mxu0 0.0
    %304 = vmatpush.msra.mxu0 0.0
    %305 = vmatpush.msra.mxu0 0.0
    %306 = vmatpush.msra.mxu0 0.0
    %307 = vmatpush.msra.mxu0 0.0
    %308 = vmatpush.msra.mxu0 0.0
    %309 = vmatpush.msra.mxu0 0.0
    %310 = vmatpush.msra.mxu0 0.0
    %311 = vmatpush.msra.mxu0 0.0
    %312 = vmatpush.msra.mxu0 0.0
    %313 = vmatpush.msra.mxu0 0.0
    %314 = vmatpush.msra.mxu0 %v273
    %315 = vmatpush.msra.mxu0 %v271
    %316 = vmatmul.f32.gmra.mxu0 %v277
    %v317 = vpop.f32.mrf.mxu0
    %v318 = vadd.f32 0.0, %v317
    %319 = vmatmul.f32.gmra.mxu0 %v280
    %v320 = vpop.f32.mrf.mxu0
    %v321 = vadd.f32 0.0, %v320
    %322 = vmatmul.f32.gmra.mxu0 %v283
    %v323 = vpop.f32.mrf.mxu0
    %v324 = vadd.f32 0.0, %v323
    %325 = vmatmul.f32.gmra.mxu0 %v286
    %v326 = vpop.f32.mrf.mxu0
    %v327 = vadd.f32 0.0, %v326
    %328 = vmatmul.f32.gmra.mxu0 %v289
    %v329 = vpop.f32.mrf.mxu0
    %v330 = vadd.f32 0.0, %v329
    %331 = vmatmul.f32.gmra.mxu0 %v292
    %v332 = vpop.f32.mrf.mxu0
    %v333 = vadd.f32 0.0, %v332
    %334 = vmatmul.f32.gmra.mxu0 %v295
    %v335 = vpop.f32.mrf.mxu0
    %v336 = vadd.f32 0.0, %v335
    %337 = vmatmul.f32.gmra.mxu0 %v298
    %v338 = vpop.f32.mrf.mxu0
    %v339 = vadd.f32 0.0, %v338
    %340 = vdwg.mxu0
    %341 = vmatpush.msra.mxu0 0.0
    %342 = vmatpush.msra.mxu0 0.0
    %343 = vmatpush.msra.mxu0 0.0
    %344 = vmatpush.msra.mxu0 0.0
    %345 = vmatpush.msra.mxu0 0.0
    %346 = vmatpush.msra.mxu0 0.0
    %347 = vmatpush.msra.mxu0 0.0
    %348 = vmatpush.msra.mxu0 0.0
    %349 = vmatpush.msra.mxu0 0.0
    %350 = vmatpush.msra.mxu0 0.0
    %351 = vmatpush.msra.mxu0 0.0
    %352 = vmatpush.msra.mxu0 0.0
    %353 = vmatpush.msra.mxu0 0.0
    %354 = vmatpush.msra.mxu0 0.0
    %355 = vmatpush.msra.mxu0 %v274
    %356 = vmatpush.msra.mxu0 %v272
    %357 = vmatmul.f32.gmra.mxu0 %v277
    %v358 = vpop.f32.mrf.mxu0
    %v359 = vadd.f32 0.0, %v358
    %360 = vmatmul.f32.gmra.mxu0 %v280
    %v361 = vpop.f32.mrf.mxu0
    %v362 = vadd.f32 0.0, %v361
    %363 = vmatmul.f32.gmra.mxu0 %v283
    %v364 = vpop.f32.mrf.mxu0
    %v365 = vadd.f32 0.0, %v364
    %366 = vmatmul.f32.gmra.mxu0 %v286
    %v367 = vpop.f32.mrf.mxu0
    %v368 = vadd.f32 0.0, %v367
    %369 = vmatmul.f32.gmra.mxu0 %v289
    %v370 = vpop.f32.mrf.mxu0
    %v371 = vadd.f32 0.0, %v370
    %372 = vmatmul.f32.gmra.mxu0 %v292
    %v373 = vpop.f32.mrf.mxu0
    %v374 = vadd.f32 0.0, %v373
    %375 = vmatmul.f32.gmra.mxu0 %v295
    %v376 = vpop.f32.mrf.mxu0
    %v377 = vadd.f32 0.0, %v376
    %378 = vmatmul.f32.gmra.mxu0 %v298
    %v379 = vpop.f32.mrf.mxu0
    %v380 = vadd.f32 0.0, %v379
    %381 = vdwg.mxu0
    %vm382 = vcmask 523264
    %v384 = vsel %vm382, %v223, 0
    %v387 = vsel %vm382, %v226, 0
    %v390 = vsel %vm382, %v229, 0
    %v393 = vsel %vm382, %v232, 0
    %v396 = vsel %vm382, %v235, 0
    %v399 = vsel %vm382, %v238, 0
    %v402 = vsel %vm382, %v241, 0
    %v405 = vsel %vm382, %v244, 0
    %407 = vmatpush.msra.mxu0 0.0
    %408 = vmatpush.msra.mxu0 0.0
    %409 = vmatpush.msra.mxu0 0.0
    %410 = vmatpush.msra.mxu0 0.0
    %411 = vmatpush.msra.mxu0 0.0
    %412 = vmatpush.msra.mxu0 0.0
    %413 = vmatpush.msra.mxu0 0.0
    %414 = vmatpush.msra.mxu0 0.0
    %415 = vmatpush.msra.mxu0 %v380
    %416 = vmatpush.msra.mxu0 %v377
    %417 = vmatpush.msra.mxu0 %v374
    %418 = vmatpush.msra.mxu0 %v371
    %419 = vmatpush.msra.mxu0 %v368
    %420 = vmatpush.msra.mxu0 %v365
    %421 = vmatpush.msra.mxu0 %v362
    %422 = vmatpush.msra.mxu0 %v359
    %423 = vmatmul.f32.gmra.mxu0 %v384
    %v424 = vpop.f32.mrf.mxu0
    %v425 = vadd.f32 0.0, %v424
    %426 = vmatmul.f32.gmra.mxu0 %v387
    %v427 = vpop.f32.mrf.mxu0
    %v428 = vadd.f32 0.0, %v427
    %429 = vmatmul.f32.gmra.mxu0 %v390
    %v430 = vpop.f32.mrf.mxu0
    %v431 = vadd.f32 0.0, %v430
    %432 = vmatmul.f32.gmra.mxu0 %v393
    %v433 = vpop.f32.mrf.mxu0
    %v434 = vadd.f32 0.0, %v433
    %435 = vmatmul.f32.gmra.mxu0 %v396
    %v436 = vpop.f32.mrf.mxu0
    %v437 = vadd.f32 0.0, %v436
    %438 = vmatmul.f32.gmra.mxu0 %v399
    %v439 = vpop.f32.mrf.mxu0
    %v440 = vadd.f32 0.0, %v439
    %441 = vmatmul.f32.gmra.mxu0 %v402
    %v442 = vpop.f32.mrf.mxu0
    %v443 = vadd.f32 0.0, %v442
    %444 = vmatmul.f32.gmra.mxu0 %v405
    %v445 = vpop.f32.mrf.mxu0
    %v446 = vadd.f32 0.0, %v445
    %447 = vdwg.mxu0
    %v448 = vadd.f32 %v318, %v425
    %v449 = vadd.f32 %v321, %v428
    %v450 = vadd.f32 %v324, %v431
    %v451 = vadd.f32 %v327, %v434
    %v452 = vadd.f32 %v330, %v437
    %v453 = vadd.f32 %v333, %v440
    %v454 = vadd.f32 %v336, %v443
    %v455 = vadd.f32 %v339, %v446
    %v456 = vadd.f32 %v448, %v449
    %v457 = vadd.f32 %v456, %v450
    %v458 = vadd.f32 %v457, %v451
    %v459 = vadd.f32 %v458, %v452
    %v460 = vadd.f32 %v459, %v453
    %v461 = vadd.f32 %v460, %v454
    %v462 = vadd.f32 %v461, %v455
    %v463 = vrot.slane %v462, 4
    %v464 = vadd.f32 %v462, %v463
    %v465 = vrot.slane %v464, 2
    %v466 = vadd.f32 %v464, %v465
    %v467 = vrot.slane %v466, 1
    %v468 = vadd.f32 %v466, %v467
    %v469 = vrcp.pop 64.0
    %v470 = vmul.f32 64.0, %v469
    %v471 = vsub.f32 1.0, %v470
    %v472 = vmul.f32 %v469, %v471
    %v473 = vadd.f32 %v469, %v472
    %vm474 = vweird.f32 %v469
    %v475 = vsel %vm474, %v469, %v473
    %v476 = vmul.f32 %v468, %v475
    %v477 = vmul.f32 %v448, %v448
    %v478 = vmul.f32 %v449, %v449
    %v479 = vmul.f32 %v450, %v450
    %v480 = vmul.f32 %v451, %v451
    %v481 = vmul.f32 %v452, %v452
    %v482 = vmul.f32 %v453, %v453
    %v483 = vmul.f32 %v454, %v454
    %v484 = vmul.f32 %v455, %v455
    %v485 = vadd.f32 %v477, %v478
    %v486 = vadd.f32 %v485, %v479
    %v487 = vadd.f32 %v486, %v480
    %v488 = vadd.f32 %v487, %v481
    %v489 = vadd.f32 %v488, %v482
    %v490 = vadd.f32 %v489, %v483
    %v491 = vadd.f32 %v490, %v484
    %v492 = vrot.slane %v491, 4
    %v493 = vadd.f32 %v491, %v492
    %v494 = vrot.slane %v493, 2
    %v495 = vadd.f32 %v493, %v494
    %v496 = vrot.slane %v495, 1
    %v497 = vadd.f32 %v495, %v496
    %v498 = vmul.f32 %v497, %v475
    %v499 = vmul.f32 %v476, %v476
    %v500 = vsub.f32 %v498, %v499
    %v501 = vmax.f32 %v500, 0.0
    %v502 = vadd.f32 %v501, 1e-05
    %v503 = vrsqrt.pop %v502
    %v504 = vmul.f32 %v503, %v502
    %v505 = vmul.f32 %v504, %v503
    %v506 = vmul.f32 0.5, %v505
    %v507 = vsub.f32 1.5, %v506
    %v508 = vmul.f32 %v503, %v507
    %vm509 = vweird.f32 %v502
    %vm510 = vweird.f32 %v503
    %vm511 = vmor %vm509, %vm510
    %v512 = vsel %vm511, %v503, %v508
    %v513 = vld [vmem:[%s5] sm:$0x1]
    %v514 = vmul.f32 %v512, %v513
    %v515 = vld [vmem:[%s6] sm:$0x1]
    %v516 = vmul.f32 %v476, %v514
    %v517 = vsub.f32 %v515, %v516
    %v518 = vperm.slane %v514, 0
    %v519 = vmul.f32 %v448, %v518
    %v520 = vmul.f32 %v449, %v518
    %v521 = vmul.f32 %v450, %v518
    %v522 = vmul.f32 %v451, %v518
    %v523 = vmul.f32 %v452, %v518
    %v524 = vmul.f32 %v453, %v518
    %v525 = vmul.f32 %v454, %v518
    %v526 = vmul.f32 %v455, %v518
    %v528 = vperm.slane %v517, 0
    %v530 = vadd.f32 %v519, %v528
    %v531 = vadd.f32 %v520, %v528
    %v532 = vadd.f32 %v521, %v528
    %v533 = vadd.f32 %v522, %v528
    %v534 = vadd.f32 %v523, %v528
    %v535 = vadd.f32 %v524, %v528
    %v536 = vadd.f32 %v525, %v528
    %v537 = vadd.f32 %v526, %v528
    %v538 = vmax.f32 %v530, 0.0
    %v539 = vmax.f32 %v531, 0.0
    %v540 = vmax.f32 %v532, 0.0
    %v541 = vmax.f32 %v533, 0.0
    %v542 = vmax.f32 %v534, 0.0
    %v543 = vmax.f32 %v535, 0.0
    %v544 = vmax.f32 %v536, 0.0
    %v545 = vmax.f32 %v537, 0.0
    %v546 = vld [vmem:[%s7] sm:$0xff]
    %v547 = vld [vmem:[%s7 + $0x8] sm:$0xff]
    %v548 = vld [vmem:[%s7 + $0x10] sm:$0xff]
    %v549 = vld [vmem:[%s7 + $0x18] sm:$0xff]
    %v550 = vld [vmem:[%s7 + $0x20] sm:$0xff]
    %v551 = vld [vmem:[%s7 + $0x28] sm:$0xff]
    %v552 = vld [vmem:[%s7 + $0x30] sm:$0xff]
    %v553 = vld [vmem:[%s7 + $0x38] sm:$0xff]
    %v554 = vld [vmem:[%s7 + $0x40] sm:$0xff]
    %v555 = vld [vmem:[%s7 + $0x48] sm:$0xff]
    %v556 = vld [vmem:[%s7 + $0x50] sm:$0xff]
    %v557 = vld [vmem:[%s7 + $0x58] sm:$0xff]
    %v558 = vld [vmem:[%s7 + $0x60] sm:$0xff]
    %v559 = vld [vmem:[%s7 + $0x68] sm:$0xff]
    %v560 = vld [vmem:[%s7 + $0x70] sm:$0xff]
    %v561 = vld [vmem:[%s7 + $0x78] sm:$0xff]
    %562 = vmatpush.msra.mxu0 %v561
    %563 = vmatpush.msra.mxu0 %v560
    %564 = vmatpush.msra.mxu0 %v559
    %565 = vmatpush.msra.mxu0 %v558
    %566 = vmatpush.msra.mxu0 %v557
    %567 = vmatpush.msra.mxu0 %v556
    %568 = vmatpush.msra.mxu0 %v555
    %569 = vmatpush.msra.mxu0 %v554
    %570 = vmatpush.msra.mxu0 %v553
    %571 = vmatpush.msra.mxu0 %v552
    %572 = vmatpush.msra.mxu0 %v551
    %573 = vmatpush.msra.mxu0 %v550
    %574 = vmatpush.msra.mxu0 %v549
    %575 = vmatpush.msra.mxu0 %v548
    %576 = vmatpush.msra.mxu0 %v547
    %577 = vmatpush.msra.mxu0 %v546
    %578 = vmatmul.f32.gmra.mxu0 %v538
    %v579 = vpop.f32.mrf.mxu0
    %v580 = vadd.f32 0.0, %v579
    %581 = vmatmul.f32.gmra.mxu0 %v539
    %v582 = vpop.f32.mrf.mxu0
    %v583 = vadd.f32 0.0, %v582
    %584 = vmatmul.f32.gmra.mxu0 %v540
    %v585 = vpop.f32.mrf.mxu0
    %v586 = vadd.f32 0.0, %v585
    %587 = vmatmul.f32.gmra.mxu0 %v541
    %v588 = vpop.f32.mrf.mxu0
    %v589 = vadd.f32 0.0, %v588
    %590 = vmatmul.f32.gmra.mxu0 %v542
    %v591 = vpop.f32.mrf.mxu0
    %v592 = vadd.f32 0.0, %v591
    %593 = vmatmul.f32.gmra.mxu0 %v543
    %v594 = vpop.f32.mrf.mxu0
    %v595 = vadd.f32 0.0, %v594
    %596 = vmatmul.f32.gmra.mxu0 %v544
    %v597 = vpop.f32.mrf.mxu0
    %v598 = vadd.f32 0.0, %v597
    %599 = vmatmul.f32.gmra.mxu0 %v545
    %v600 = vpop.f32.mrf.mxu0
    %v601 = vadd.f32 0.0, %v600
    %602 = vdwg.mxu0
    %611 = vrot.lane.b32.xlu0 %v580, 64
    %v612 = vpop.permute.xlu0 %611
    %613 = vrot.lane.b32.xlu0 %v583, 64
    %v614 = vpop.permute.xlu0 %613
    %615 = vrot.lane.b32.xlu0 %v586, 64
    %v616 = vpop.permute.xlu0 %615
    %617 = vrot.lane.b32.xlu0 %v589, 64
    %v618 = vpop.permute.xlu0 %617
    %619 = vrot.lane.b32.xlu0 %v592, 64
    %v620 = vpop.permute.xlu0 %619
    %621 = vrot.lane.b32.xlu0 %v595, 64
    %v622 = vpop.permute.xlu0 %621
    %623 = vrot.lane.b32.xlu0 %v598, 64
    %v624 = vpop.permute.xlu0 %623
    %625 = vrot.lane.b32.xlu0 %v601, 64
    %v626 = vpop.permute.xlu0 %625
    %635 = vmatpush.msra.mxu0 0.0
    %636 = vmatpush.msra.mxu0 0.0
    %637 = vmatpush.msra.mxu0 0.0
    %638 = vmatpush.msra.mxu0 0.0
    %639 = vmatpush.msra.mxu0 0.0
    %640 = vmatpush.msra.mxu0 0.0
    %641 = vmatpush.msra.mxu0 0.0
    %642 = vmatpush.msra.mxu0 0.0
    %643 = vmatpush.msra.mxu0 %v626
    %644 = vmatpush.msra.mxu0 %v624
    %645 = vmatpush.msra.mxu0 %v622
    %646 = vmatpush.msra.mxu0 %v620
    %647 = vmatpush.msra.mxu0 %v618
    %648 = vmatpush.msra.mxu0 %v616
    %649 = vmatpush.msra.mxu0 %v614
    %650 = vmatpush.msra.mxu0 %v612
    %651 = vmatmul.f32.gmra.mxu0 %v384
    %v652 = vpop.f32.mrf.mxu0
    %v653 = vadd.f32 0.0, %v652
    %654 = vmatmul.f32.gmra.mxu0 %v387
    %v655 = vpop.f32.mrf.mxu0
    %v656 = vadd.f32 0.0, %v655
    %657 = vmatmul.f32.gmra.mxu0 %v390
    %v658 = vpop.f32.mrf.mxu0
    %v659 = vadd.f32 0.0, %v658
    %660 = vmatmul.f32.gmra.mxu0 %v393
    %v661 = vpop.f32.mrf.mxu0
    %v662 = vadd.f32 0.0, %v661
    %663 = vmatmul.f32.gmra.mxu0 %v396
    %v664 = vpop.f32.mrf.mxu0
    %v665 = vadd.f32 0.0, %v664
    %666 = vmatmul.f32.gmra.mxu0 %v399
    %v667 = vpop.f32.mrf.mxu0
    %v668 = vadd.f32 0.0, %v667
    %669 = vmatmul.f32.gmra.mxu0 %v402
    %v670 = vpop.f32.mrf.mxu0
    %v671 = vadd.f32 0.0, %v670
    %672 = vmatmul.f32.gmra.mxu0 %v405
    %v673 = vpop.f32.mrf.mxu0
    %v674 = vadd.f32 0.0, %v673
    %675 = vdwg.mxu0
    %v676 = vadd.f32 %v580, %v653
    %v677 = vadd.f32 %v583, %v656
    %v678 = vadd.f32 %v586, %v659
    %v679 = vadd.f32 %v589, %v662
    %v680 = vadd.f32 %v592, %v665
    %v681 = vadd.f32 %v595, %v668
    %v682 = vadd.f32 %v598, %v671
    %v683 = vadd.f32 %v601, %v674
    %v684 = vsel %vm382, %v676, 0.0
    %v685 = vsel %vm382, %v677, 0.0
    %v686 = vadd.f32 %v684, %v685
    %v687 = vsel %vm382, %v678, 0.0
    %v688 = vadd.f32 %v686, %v687
    %v689 = vsel %vm382, %v679, 0.0
    %v690 = vadd.f32 %v688, %v689
    %v691 = vsel %vm382, %v680, 0.0
    %v692 = vadd.f32 %v690, %v691
    %v693 = vsel %vm382, %v681, 0.0
    %v694 = vadd.f32 %v692, %v693
    %v695 = vsel %vm382, %v682, 0.0
    %v696 = vadd.f32 %v694, %v695
    %v697 = vsel %vm382, %v683, 0.0
    %v698 = vadd.f32 %v696, %v697
    %v699 = vrot.slane %v698, 4
    %v700 = vadd.f32 %v698, %v699
    %v701 = vrot.slane %v700, 2
    %v702 = vadd.f32 %v700, %v701
    %v703 = vrot.slane %v702, 1
    %v704 = vadd.f32 %v702, %v703
    %v705 = vmul.f32 %v704, %v475
    %v706 = vmul.f32 %v676, %v676
    %v707 = vmul.f32 %v677, %v677
    %v708 = vmul.f32 %v678, %v678
    %v709 = vmul.f32 %v679, %v679
    %v710 = vmul.f32 %v680, %v680
    %v711 = vmul.f32 %v681, %v681
    %v712 = vmul.f32 %v682, %v682
    %v713 = vmul.f32 %v683, %v683
    %v714 = vsel %vm382, %v706, 0.0
    %v715 = vsel %vm382, %v707, 0.0
    %v716 = vadd.f32 %v714, %v715
    %v717 = vsel %vm382, %v708, 0.0
    %v718 = vadd.f32 %v716, %v717
    %v719 = vsel %vm382, %v709, 0.0
    %v720 = vadd.f32 %v718, %v719
    %v721 = vsel %vm382, %v710, 0.0
    %v722 = vadd.f32 %v720, %v721
    %v723 = vsel %vm382, %v711, 0.0
    %v724 = vadd.f32 %v722, %v723
    %v725 = vsel %vm382, %v712, 0.0
    %v726 = vadd.f32 %v724, %v725
    %v727 = vsel %vm382, %v713, 0.0
    %v728 = vadd.f32 %v726, %v727
    %v729 = vrot.slane %v728, 4
    %v730 = vadd.f32 %v728, %v729
    %v731 = vrot.slane %v730, 2
    %v732 = vadd.f32 %v730, %v731
    %v733 = vrot.slane %v732, 1
    %v734 = vadd.f32 %v732, %v733
    %v735 = vmul.f32 %v734, %v475
    %v736 = vmul.f32 %v705, %v705
    %v737 = vsub.f32 %v735, %v736
    %v738 = vmax.f32 %v737, 0.0
    %v739 = vadd.f32 %v738, 1e-05
    %v740 = vrsqrt.pop %v739
    %v741 = vmul.f32 %v740, %v739
    %v742 = vmul.f32 %v741, %v740
    %v743 = vmul.f32 0.5, %v742
    %v744 = vsub.f32 1.5, %v743
    %v745 = vmul.f32 %v740, %v744
    %vm746 = vweird.f32 %v739
    %vm747 = vweird.f32 %v740
    %vm748 = vmor %vm746, %vm747
    %v749 = vsel %vm748, %v740, %v745
    %v750 = vld [vmem:[%s8] sm:$0x1]
    %v751 = vmul.f32 %v749, %v750
    %v752 = vld [vmem:[%s9] sm:$0x1]
    %v753 = vmul.f32 %v705, %v751
    %v754 = vsub.f32 %v752, %v753
    %v755 = vperm.slane %v751, 0
    %v756 = vmul.f32 %v676, %v755
    %v757 = vmul.f32 %v677, %v755
    %v758 = vmul.f32 %v678, %v755
    %v759 = vmul.f32 %v679, %v755
    %v760 = vmul.f32 %v680, %v755
    %v761 = vmul.f32 %v681, %v755
    %v762 = vmul.f32 %v682, %v755
    %v763 = vmul.f32 %v683, %v755
    %v765 = vperm.slane %v754, 0
    %v767 = vadd.f32 %v756, %v765
    %v768 = vadd.f32 %v757, %v765
    %v769 = vadd.f32 %v758, %v765
    %v770 = vadd.f32 %v759, %v765
    %v771 = vadd.f32 %v760, %v765
    %v772 = vadd.f32 %v761, %v765
    %v773 = vadd.f32 %v762, %v765
    %v774 = vadd.f32 %v763, %v765
    %v775 = vmax.f32 %v767, 0.0
    %v776 = vmax.f32 %v768, 0.0
    %v777 = vmax.f32 %v769, 0.0
    %v778 = vmax.f32 %v770, 0.0
    %v779 = vmax.f32 %v771, 0.0
    %v780 = vmax.f32 %v772, 0.0
    %v781 = vmax.f32 %v773, 0.0
    %v782 = vmax.f32 %v774, 0.0
    %v783 = vld [vmem:[%s10] sm:$0xff]
    %v784 = vld [vmem:[%s10 + $0x8] sm:$0xff]
    %v785 = vld [vmem:[%s10 + $0x10] sm:$0xff]
    %v786 = vld [vmem:[%s10 + $0x18] sm:$0xff]
    %v787 = vld [vmem:[%s10 + $0x20] sm:$0xff]
    %v788 = vld [vmem:[%s10 + $0x28] sm:$0xff]
    %v789 = vld [vmem:[%s10 + $0x30] sm:$0xff]
    %v790 = vld [vmem:[%s10 + $0x38] sm:$0xff]
    %v792 = vsel %vm382, %v775, 0
    %v795 = vsel %vm382, %v776, 0
    %v798 = vsel %vm382, %v777, 0
    %v801 = vsel %vm382, %v778, 0
    %v804 = vsel %vm382, %v779, 0
    %v807 = vsel %vm382, %v780, 0
    %v810 = vsel %vm382, %v781, 0
    %v813 = vsel %vm382, %v782, 0
    %815 = vmatpush.msra.mxu0 0.0
    %816 = vmatpush.msra.mxu0 0.0
    %817 = vmatpush.msra.mxu0 0.0
    %818 = vmatpush.msra.mxu0 0.0
    %819 = vmatpush.msra.mxu0 0.0
    %820 = vmatpush.msra.mxu0 0.0
    %821 = vmatpush.msra.mxu0 0.0
    %822 = vmatpush.msra.mxu0 0.0
    %823 = vmatpush.msra.mxu0 %v790
    %824 = vmatpush.msra.mxu0 %v789
    %825 = vmatpush.msra.mxu0 %v788
    %826 = vmatpush.msra.mxu0 %v787
    %827 = vmatpush.msra.mxu0 %v786
    %828 = vmatpush.msra.mxu0 %v785
    %829 = vmatpush.msra.mxu0 %v784
    %830 = vmatpush.msra.mxu0 %v783
    %831 = vmatmul.f32.gmra.mxu0 %v792
    %v832 = vpop.f32.mrf.mxu0
    %v833 = vadd.f32 0.0, %v832
    %834 = vmatmul.f32.gmra.mxu0 %v795
    %v835 = vpop.f32.mrf.mxu0
    %v836 = vadd.f32 0.0, %v835
    %837 = vmatmul.f32.gmra.mxu0 %v798
    %v838 = vpop.f32.mrf.mxu0
    %v839 = vadd.f32 0.0, %v838
    %840 = vmatmul.f32.gmra.mxu0 %v801
    %v841 = vpop.f32.mrf.mxu0
    %v842 = vadd.f32 0.0, %v841
    %843 = vmatmul.f32.gmra.mxu0 %v804
    %v844 = vpop.f32.mrf.mxu0
    %v845 = vadd.f32 0.0, %v844
    %846 = vmatmul.f32.gmra.mxu0 %v807
    %v847 = vpop.f32.mrf.mxu0
    %v848 = vadd.f32 0.0, %v847
    %849 = vmatmul.f32.gmra.mxu0 %v810
    %v850 = vpop.f32.mrf.mxu0
    %v851 = vadd.f32 0.0, %v850
    %852 = vmatmul.f32.gmra.mxu0 %v813
    %v853 = vpop.f32.mrf.mxu0
    %v854 = vadd.f32 0.0, %v853
    %855 = vdwg.mxu0
    %864 = vrot.lane.b32.xlu0 %v833, 96
    %v865 = vpop.permute.xlu0 %864
    %866 = vrot.lane.b32.xlu0 %v836, 96
    %v867 = vpop.permute.xlu0 %866
    %868 = vrot.lane.b32.xlu0 %v839, 96
    %v869 = vpop.permute.xlu0 %868
    %870 = vrot.lane.b32.xlu0 %v842, 96
    %v871 = vpop.permute.xlu0 %870
    %872 = vrot.lane.b32.xlu0 %v845, 96
    %v873 = vpop.permute.xlu0 %872
    %874 = vrot.lane.b32.xlu0 %v848, 96
    %v875 = vpop.permute.xlu0 %874
    %876 = vrot.lane.b32.xlu0 %v851, 96
    %v877 = vpop.permute.xlu0 %876
    %878 = vrot.lane.b32.xlu0 %v854, 96
    %v879 = vpop.permute.xlu0 %878
    %888 = vmatpush.msra.mxu0 0.0
    %889 = vmatpush.msra.mxu0 0.0
    %890 = vmatpush.msra.mxu0 0.0
    %891 = vmatpush.msra.mxu0 0.0
    %892 = vmatpush.msra.mxu0 0.0
    %893 = vmatpush.msra.mxu0 0.0
    %894 = vmatpush.msra.mxu0 0.0
    %895 = vmatpush.msra.mxu0 0.0
    %896 = vmatpush.msra.mxu0 %v879
    %897 = vmatpush.msra.mxu0 %v877
    %898 = vmatpush.msra.mxu0 %v875
    %899 = vmatpush.msra.mxu0 %v873
    %900 = vmatpush.msra.mxu0 %v871
    %901 = vmatpush.msra.mxu0 %v869
    %902 = vmatpush.msra.mxu0 %v867
    %903 = vmatpush.msra.mxu0 %v865
    %904 = vmatmul.f32.gmra.mxu0 %v384
    %v905 = vpop.f32.mrf.mxu0
    %v906 = vadd.f32 0.0, %v905
    %907 = vmatmul.f32.gmra.mxu0 %v387
    %v908 = vpop.f32.mrf.mxu0
    %v909 = vadd.f32 0.0, %v908
    %910 = vmatmul.f32.gmra.mxu0 %v390
    %v911 = vpop.f32.mrf.mxu0
    %v912 = vadd.f32 0.0, %v911
    %913 = vmatmul.f32.gmra.mxu0 %v393
    %v914 = vpop.f32.mrf.mxu0
    %v915 = vadd.f32 0.0, %v914
    %916 = vmatmul.f32.gmra.mxu0 %v396
    %v917 = vpop.f32.mrf.mxu0
    %v918 = vadd.f32 0.0, %v917
    %919 = vmatmul.f32.gmra.mxu0 %v399
    %v920 = vpop.f32.mrf.mxu0
    %v921 = vadd.f32 0.0, %v920
    %922 = vmatmul.f32.gmra.mxu0 %v402
    %v923 = vpop.f32.mrf.mxu0
    %v924 = vadd.f32 0.0, %v923
    %925 = vmatmul.f32.gmra.mxu0 %v405
    %v926 = vpop.f32.mrf.mxu0
    %v927 = vadd.f32 0.0, %v926
    %928 = vdwg.mxu0
    %v929 = vadd.f32 %v833, %v906
    %v930 = vadd.f32 %v836, %v909
    %v931 = vadd.f32 %v839, %v912
    %v932 = vadd.f32 %v842, %v915
    %v933 = vadd.f32 %v845, %v918
    %v934 = vadd.f32 %v848, %v921
    %v935 = vadd.f32 %v851, %v924
    %v936 = vadd.f32 %v854, %v927
    %v937 = vld [vmem:[%s11] sm:$0x1]
    %v939 = vperm.slane %v937, 0
    %v941 = vadd.f32 %v929, %v939
    %v942 = vadd.f32 %v930, %v939
    %v943 = vadd.f32 %v931, %v939
    %v944 = vadd.f32 %v932, %v939
    %v945 = vadd.f32 %v933, %v939
    %v946 = vadd.f32 %v934, %v939
    %v947 = vadd.f32 %v935, %v939
    %v948 = vadd.f32 %v936, %v939
    %v949 = vmax.f32 %v941, 0.0
    %v950 = vmax.f32 %v942, 0.0
    %v951 = vmax.f32 %v943, 0.0
    %v952 = vmax.f32 %v944, 0.0
    %v953 = vmax.f32 %v945, 0.0
    %v954 = vmax.f32 %v946, 0.0
    %v955 = vmax.f32 %v947, 0.0
    %v956 = vmax.f32 %v948, 0.0
    %v958 = vsel %vm382, %v270, 0
    %960 = vmatpush.msra.mxu0 0.0
    %961 = vmatpush.msra.mxu0 0.0
    %962 = vmatpush.msra.mxu0 0.0
    %963 = vmatpush.msra.mxu0 0.0
    %964 = vmatpush.msra.mxu0 0.0
    %965 = vmatpush.msra.mxu0 0.0
    %966 = vmatpush.msra.mxu0 0.0
    %967 = vmatpush.msra.mxu0 0.0
    %968 = vmatpush.msra.mxu0 %v956
    %969 = vmatpush.msra.mxu0 %v955
    %970 = vmatpush.msra.mxu0 %v954
    %971 = vmatpush.msra.mxu0 %v953
    %972 = vmatpush.msra.mxu0 %v952
    %973 = vmatpush.msra.mxu0 %v951
    %974 = vmatpush.msra.mxu0 %v950
    %975 = vmatpush.msra.mxu0 %v949
    %976 = vmatmul.f32.gmra.mxu0 %v958
    %v977 = vpop.f32.mrf.mxu0
    %v978 = vadd.f32 0.0, %v977
    %979 = vdwg.mxu0
    %v980 = vld [vmem:[%s12] sm:$0xff]
    %v981 = vld [vmem:[%s12 + $0x8] sm:$0xff]
    %v982 = vld [vmem:[%s12 + $0x10] sm:$0xff]
    %v983 = vld [vmem:[%s12 + $0x18] sm:$0xff]
    %v984 = vld [vmem:[%s13] sm:$0x1]
    %v986 = vperm.slane %v984, 0
    %vm988 = vcmask 261120
    %v990 = vsel %vm988, %v978, 0
    %992 = vmatpush.msra.mxu0 0.0
    %993 = vmatpush.msra.mxu0 0.0
    %994 = vmatpush.msra.mxu0 0.0
    %995 = vmatpush.msra.mxu0 0.0
    %996 = vmatpush.msra.mxu0 0.0
    %997 = vmatpush.msra.mxu0 0.0
    %998 = vmatpush.msra.mxu0 0.0
    %999 = vmatpush.msra.mxu0 0.0
    %1000 = vmatpush.msra.mxu0 0.0
    %1001 = vmatpush.msra.mxu0 0.0
    %1002 = vmatpush.msra.mxu0 0.0
    %1003 = vmatpush.msra.mxu0 0.0
    %1004 = vmatpush.msra.mxu0 %v983
    %1005 = vmatpush.msra.mxu0 %v982
    %1006 = vmatpush.msra.mxu0 %v981
    %1007 = vmatpush.msra.mxu0 %v980
    %1008 = vmatmul.f32.gmra.mxu0 %v990
    %v1009 = vpop.f32.mrf.mxu0
    %v1010 = vadd.f32 %v986, %v1009
    %1011 = vdwg.mxu0
    %vm1012 = vcmask 58368
    %v1013 = vsel %vm1012, %v1010, -inf
    %1014 = vmax.xlane.f32.xlu0 %v1013
    %v1015 = vpop.xlane.xlu0 %1014
    %v1016 = vsub.f32 %v1010, %v1015
    %v1017 = vmul.f32 %v1016, 1.442695
    %v1018 = vpow.pop %v1017
    %v1019 = vsel %vm1012, %v1018, 0.0
    %1020 = vadd.xlane.f32.xlu0 %v1019
    %v1021 = vpop.xlane.xlu0 %1020
    %v1022 = vlog2.pop %v1021
    %v1023 = vmul.f32 %v1022, 0.6931472
    %v1024 = vsub.f32 %v1016, %v1023
    %1025 = vst.msk [vmem:[#allocation2] sm:$0x3] %vm1012, %v1024
    // Predicated region
    $region58: #{captcha_gnn_forward.1} parent=1 // pred_check
      _
    $region59: #{captcha_gnn_forward.1} parent=1 // pred_check_branch
      %1027 = sbr.rel (0) target = $region61
    $region60: #{captcha_gnn_forward.1} parent=1 // pred_region
      %1029 = vsyncadd [#allocation3], 0
      %s1031 = sshll.u32 [#allocation2], 4
      %s1032 = int_to_ptr.vmem [resolvable:$true] %s1031
      %s1033 = sshll.u32 %s14, 4
      %s1034 = int_to_ptr.hbm [resolvable:$true] %s1033
      %1036 = dma.vmem_to_hbm [thread:$0]  %s1032, 32, %s1034, [#allocation3]
    $region61: #{captcha_gnn_forward.1} parent=1 // pred_fallthru
      _
    // Predicated region
    $region62: #{captcha_gnn_forward.1} parent=1 // pred_check
      _
    $region63: #{captcha_gnn_forward.1} parent=1 // pred_check_branch
      %1038 = sbr.rel (0) target = $region65
    $region64: #{captcha_gnn_forward.1} parent=1 // pred_region
      %1040 = dma.done [#allocation3], 32
    $region65: #{captcha_gnn_forward.1} parent=1 // pred_fallthru
      _
    %1041 = vsyncpa [#allocation3], 1

</llo_original>
